<compile_context>
chip_gen: v7x
topology: tpu7x:2x2x1
jax: 0.10.0
libtpu: 0.0.40
codegen_flags: <defaults>
</compile_context>

<pallas_src>
import jax
import jax.numpy as jnp
import numpy as np
from jax.experimental import pallas as pl
from jax.experimental.pallas import tpu as pltpu

MAXPAD = 3      # largest conv half-width in the block (kernel_size = 7)
LANE = 128      # TPU vreg lane width


def _round_up(x, m):
    return (x + m - 1) // m * m


# ----------------------------- weight packing ---------------------------------
def _pack_params(params, C, dtype):
    """Pack the 9 conv weights into 4 small 2-D matmul operands.

    Every conv is evaluated as  W @ stack_d(roll(input, -d)) , so each packed
    weight has one column block per tap d (left-to-right d = -pad .. +pad).

      W1 : (4, 5*C)        rows = [c1, c3, c5, c35-first] over x            (taps -2..2)
      Wm : (C, 8)          cols 0..2 = concat_c1 for x1..x3,
                           cols 3..7 = concat_c1[:,3] * c35-second taps     (taps -2..2)
      W2 : (C2p, 5*C)      rows 0..C-1 = avg_replace, C..2C-1 = max_replace (taps -2..2)
      W3 : (C, 7*C2p)      c7 over the stacked (avg, max) rows              (taps -3..3)
    """
    wc1, wc3, wc5, wc35a, wc35b, wcc1, wavg, wmax, wc7 = [np.asarray(p) for p in params]
    F = wc1.shape[0]
    assert F == 1, "packing assumes n_features == 1 (PyTorch module default)"
    assert wcc1.shape[0] == C and wavg.shape[0] == C and wc7.shape[0] == C

    C2 = 2 * C
    C2p = _round_up(C2, 8)

    # ---- x-source convs: c1 (k=1), c3 (k=3), c5 (k=5), c35 first conv (k=3)
    W1 = np.zeros((4, 5 * C), np.float32)
    W1[0, 2 * C:3 * C] = wc1[0, :, 0]                 # tap d = 0
    for t in (1, 2, 3):                               # taps d = -1, 0, 1
        W1[1, t * C:(t + 1) * C] = wc3[0, :, t - 1]
        W1[3, t * C:(t + 1) * C] = wc35a[0, :, t - 1]
    for t in range(5):                                # taps d = -2..2
        W1[2, t * C:(t + 1) * C] = wc5[0, :, t]

    # ---- concat 1x1 conv with the c35 second conv (Cin=Cout=1) folded in
    Wm = np.concatenate(
        [wcc1[:, 0:3, 0],                             # x1, x2, x3 columns
         wcc1[:, 3:4, 0] * wc35b[0, 0, :][None, :]],  # x4 taps, pre-multiplied
        axis=1)                                       # (C, 8)

    # ---- SpatialAttention avg_replace (k=3) + max_replace (k=5), stacked rows
    W2 = np.zeros((C2p, 5 * C), np.float32)
    for t in (1, 2, 3):
        W2[0:C, t * C:(t + 1) * C] = wavg[:, :, t - 1]
    for t in range(5):
        W2[C:2 * C, t * C:(t + 1) * C] = wmax[:, :, t]

    # ---- c7 over channel-concat(avg, max)
    W3 = np.zeros((C, 7 * C2p), np.float32)
    for t in range(7):                                # taps d = -3..3
        W3[:, t * C2p:t * C2p + C2] = wc7[:, :, t]

    cast = lambda a: jnp.asarray(a, dtype)
    return cast(W1), cast(Wm), cast(W2), cast(W3), C2p


# ------------------------------ Pallas wrapper ---------------------------------
def srblock_pallas(x, params, *, tile_batches=None, max_tile_lanes=2048,
                   use_bf16=False):
    B, C, L = x.shape
    LPpad = _round_up(L + 2 * MAXPAD, LANE)           # per-batch lane segment

    mxu_dtype = jnp.bfloat16 if use_bf16 else jnp.float32
    W1, Wm, W2, W3, C2p = _pack_params(params, C, mxu_dtype)

    # whole batches per tile -> halos are self-contained inside each block
    if tile_batches is None:
        tile_batches = max(1, min(B, max_tile_lanes // LPpad))
        while B % tile_batches:
            tile_batches -= 1
    assert B % tile_batches == 0, "tile_batches must divide the batch size"
    TN = tile_batches * LPpad
    num_tiles = B // tile_batches

    # lane-folded slab: batch b occupies lanes [b*LPpad, (b+1)*LPpad), real data
    # at local positions [MAXPAD, MAXPAD+L), zeros elsewhere (the conv halo).
    xf = jnp.pad(x, ((0, 0), (0, 0), (MAXPAD, LPpad - L - MAXPAD)))   # (B, C, LPpad)
    xf = jnp.transpose(xf, (1, 0, 2)).reshape(C, B * LPpad)

    # interior-lane mask: 1.0 on real samples, 0.0 on halo/pad lanes
    seg = np.zeros((LPpad,), np.float32)
    seg[MAXPAD:MAXPAD + L] = 1.0
    mask_full = jnp.asarray(np.tile(seg, B)[None, :])                 # (1, B*LPpad)

    def kernel(mask_ref, x_ref, w1_ref, wm_ref, w2_ref, w3_ref, o_ref):
        xv = x_ref[...]                                # (C, TN)  f32
        mask = mask_ref[...]                           # (1, TN)  0/1 f32

        def lane_shift(a, d):
            # value at lane p becomes a[..., p + d]; the circular wrap only ever
            # lands on halo lanes, which are masked / discarded downstream.
            if d == 0:
                return a
            return pltpu.roll(a, shift=(-d) % TN, axis=1)

        def shifted_stack(a, taps, pad):
            return jnp.concatenate(
                [lane_shift(a, t - pad) for t in range(taps)], axis=0)

        def mxu(w_ref, a):
            w = w_ref[...]
            return jnp.dot(w, a.astype(w.dtype),
                           preferred_element_type=jnp.float32)

        # ---- MultiKernelConv: c1 / c3 / c5 / c35-first in ONE MXU push --------
        t = jnp.tanh(mxu(w1_ref, shifted_stack(xv, 5, 2)))            # (4, TN)
        t35m = t[3:4, :] * mask            # zero-padded c35 intermediate (1, TN)

        # ---- concat 1x1 conv (+ folded c35 second conv) in ONE push -----------
        s = jnp.concatenate([t[0:3, :], shifted_stack(t35m, 5, 2)], axis=0)  # (8, TN)
        y = jnp.tanh(mxu(wm_ref, s))                                   # (C, TN)
        ym = y * mask

        # ---- SpatialAttention: avg_replace + max_replace in ONE push ----------
        am = mxu(w2_ref, shifted_stack(ym, 5, 2))                      # (C2p, TN)
        amm = am * mask

        # ---- c7 over concat(avg, max), ONE push --------------------------------
        c7 = mxu(w3_ref, shifted_stack(amm, 7, 3))                     # (C, TN)

        sa = jax.nn.sigmoid(c7) * jnp.tanh(c7) + y     # SpatialAttention output
        # halo / pad lanes of the store are garbage by design; the wrapper only
        # reads back the interior lanes of each batch segment.
        o_ref[...] = (xv + sa).astype(o_ref.dtype)

    # per-tile working-set estimate (stacked taps + temporaries, f32) + headroom
    est = 4 * TN * (40 * C + 64)
    vmem_limit = int(min(64 * 2**20, max(32 * 2**20, 2 * est)))

    out_f = pl.pallas_call(
        kernel,
        out_shape=jax.ShapeDtypeStruct((C, B * LPpad), x.dtype),
        grid_spec=pltpu.PrefetchScalarGridSpec(
            num_scalar_prefetch=0,
            grid=(num_tiles,),
            in_specs=[
                pl.BlockSpec((1, TN), lambda i: (0, i)),        # mask
                pl.BlockSpec((C, TN), lambda i: (0, i)),        # x slab
                pl.BlockSpec(W1.shape, lambda i: (0, 0)),       # packed weights
                pl.BlockSpec(Wm.shape, lambda i: (0, 0)),
                pl.BlockSpec(W2.shape, lambda i: (0, 0)),
                pl.BlockSpec(W3.shape, lambda i: (0, 0)),
            ],
            out_specs=pl.BlockSpec((C, TN), lambda i: (0, i)),
        ),
        compiler_params=pltpu.CompilerParams(
            dimension_semantics=("parallel",),
            vmem_limit_bytes=vmem_limit),
    )(mask_full, xf, W1, Wm, W2, W3)

    # unfold: (C, B*LPpad) -> (B, C, L); halo / pad lanes are discarded here
    out = out_f.reshape(C, B, LPpad)[:, :, MAXPAD:MAXPAD + L]
    return jnp.transpose(out, (1, 0, 2))


# ----------------------------- pure-JAX reference ------------------------------
def _conv1d_ref(x, w, p):
    return jax.lax.conv_general_dilated(
        x, w, window_strides=(1,), padding=[(p, p)],
        dimension_numbers=('NCH', 'OIH', 'NCH'))


def srblock_ref(x, params):
    wc1, wc3, wc5, wc35a, wc35b, wcc1, wavg, wmax, wc7 = params
    x1 = jnp.tanh(_conv1d_ref(x, wc1, 0))
    x2 = jnp.tanh(_conv1d_ref(x, wc3, 1))
    x3 = jnp.tanh(_conv1d_ref(x, wc5, 2))
    x4 = _conv1d_ref(jnp.tanh(_conv1d_ref(x, wc35a, 1)), wc35b, 2)
    y = jnp.tanh(_conv1d_ref(jnp.concatenate([x1, x2, x3, x4], axis=1), wcc1, 0))
    avg_c = _conv1d_ref(y, wavg, 1)
    max_c = _conv1d_ref(y, wmax, 2)
    c7 = _conv1d_ref(jnp.concatenate([avg_c, max_c], axis=1), wc7, 3)
    sa = jax.nn.sigmoid(c7) * jnp.tanh(c7) + y
    return x + sa


# ------------------------------ parameter init ---------------------------------
def init_params(key, in_channels, out_channels, n_features=1):
    keys = jax.random.split(key, 9)

    def u(k, shape, fan_in):
        bound = 1.0 / np.sqrt(fan_in)
        return jax.random.uniform(k, shape, jnp.float32, -bound, bound)

    C, F = in_channels, n_features
    wc1 = u(keys[0], (F, C, 1), C * 1)
    wc3 = u(keys[1], (F, C, 3), C * 3)
    wc5 = u(keys[2], (F, C, 5), C * 5)
    wc35a = u(keys[3], (F, C, 3), C * 3)
    wc35b = u(keys[4], (F, F, 5), F * 5)
    wcc1 = u(keys[5], (out_channels, 4 * F, 1), 4 * F)
    wavg = u(keys[6], (out_channels, out_channels, 3), out_channels * 3)
    wmax = u(keys[7], (out_channels, out_channels, 5), out_channels * 5)
    wc7 = u(keys[8], (out_channels, 2 * out_channels, 7), 2 * out_channels * 7)
    return (wc1, wc3, wc5, wc35a, wc35b, wcc1, wavg, wmax, wc7)


if __name__ == "__main__":
    key = jax.random.PRNGKey(0)
    kx, kp = jax.random.split(key)
    B, C, L = 2, 4, 16           # SRBlock residual requires in_channels == out_channels
    x = jax.random.normal(kx, (B, C, L), jnp.float32)
    params = init_params(kp, C, C)

    # tile_batches=1 -> one batch segment per grid step (grid=(2,)), exercising
    # the pipelined, megacore-parallel path even at this tiny size.
    out = srblock_pallas(x, params, tile_batches=1)
    out = jax.block_until_ready(out)

    ref = srblock_ref(x, params)
    np.testing.assert_allclose(np.asarray(out), np.asarray(ref),
                               atol=1e-5, rtol=1e-5)
    print("KERNEL_OK")
</pallas_src>

<mosaic_0001>
module attributes {stable_mosaic.version = 11 : i64} {
  func.func @kernel(%arg0: i32, %arg1: memref<1x128xf32, #tpu.memory_space<vmem>>, %arg2: memref<4x128xf32, #tpu.memory_space<vmem>>, %arg3: memref<4x20xf32, #tpu.memory_space<vmem>>, %arg4: memref<4x8xf32, #tpu.memory_space<vmem>>, %arg5: memref<8x20xf32, #tpu.memory_space<vmem>>, %arg6: memref<4x56xf32, #tpu.memory_space<vmem>>, %arg7: memref<4x128xf32, #tpu.memory_space<vmem>>) attributes {dimension_semantics = [#tpu.dimension_semantics<parallel>], iteration_bounds = array<i64: 2>, scalar_prefetch = 0 : i64, scratch_operands = 0 : i64, tpu.core_type = #tpu.core_type<tc>, window_params = [{transform_indices = @transform_0, window_bounds = array<i64: 1, 128>}, {transform_indices = @transform_1, window_bounds = array<i64: 4, 128>}, {pipeline_mode = #tpu.pipeline_mode<synchronous>, transform_indices = @transform_2, window_bounds = array<i64: 4, 20>}, {pipeline_mode = #tpu.pipeline_mode<synchronous>, transform_indices = @transform_3, window_bounds = array<i64: 4, 8>}, {pipeline_mode = #tpu.pipeline_mode<synchronous>, transform_indices = @transform_4, window_bounds = array<i64: 8, 20>}, {pipeline_mode = #tpu.pipeline_mode<synchronous>, transform_indices = @transform_5, window_bounds = array<i64: 4, 56>}, {transform_indices = @transform_6, window_bounds = array<i64: 4, 128>}]} {
    %c0 = arith.constant 0 : index
    %c0_0 = arith.constant 0 : index
    %0 = vector.load %arg2[%c0, %c0_0] : memref<4x128xf32, #tpu.memory_space<vmem>>, vector<4x128xf32>
    %c0_1 = arith.constant 0 : index
    %c0_2 = arith.constant 0 : index
    %1 = vector.load %arg1[%c0_1, %c0_2] : memref<1x128xf32, #tpu.memory_space<vmem>>, vector<1x128xf32>
    %c2_i32 = arith.constant 2 : i32
    %2 = tpu.dynamic_rotate %0 by %c2_i32 dim 1 : vector<4x128xf32>, i32 -> vector<4x128xf32>
    %c1_i32 = arith.constant 1 : i32
    %3 = tpu.dynamic_rotate %0 by %c1_i32 dim 1 : vector<4x128xf32>, i32 -> vector<4x128xf32>
    %c127_i32 = arith.constant 127 : i32
    %4 = tpu.dynamic_rotate %0 by %c127_i32 dim 1 : vector<4x128xf32>, i32 -> vector<4x128xf32>
    %c126_i32 = arith.constant 126 : i32
    %5 = tpu.dynamic_rotate %0 by %c126_i32 dim 1 : vector<4x128xf32>, i32 -> vector<4x128xf32>
    %6 = tpu.concatenate %2, %3, %0, %4, %5 in 0 : vector<4x128xf32>, vector<4x128xf32>, vector<4x128xf32>, vector<4x128xf32>, vector<4x128xf32> -> vector<20x128xf32>
    %c0_3 = arith.constant 0 : index
    %c0_4 = arith.constant 0 : index
    %7 = vector.load %arg3[%c0_3, %c0_4] : memref<4x20xf32, #tpu.memory_space<vmem>>, vector<4x20xf32>
    %cst = arith.constant dense<0.000000e+00> : vector<4x128xf32>
    %8 = tpu.matmul %7, %6, %cst {dimension_numbers = #tpu.dot_dimension_numbers<[1], [0], [0], [1], [0, 0, 1, 1], [], []>} : vector<4x20xf32>, vector<20x128xf32>, vector<4x128xf32> -> vector<4x128xf32>
    %9 = math.tanh %8 : vector<4x128xf32>
    %10 = vector.extract_strided_slice %9 {offsets = [3, 0], sizes = [1, 128], strides = [1, 1]} : vector<4x128xf32> to vector<1x128xf32>
    %11 = arith.mulf %10, %1 : vector<1x128xf32>
    %12 = vector.extract_strided_slice %9 {offsets = [0, 0], sizes = [3, 128], strides = [1, 1]} : vector<4x128xf32> to vector<3x128xf32>
    %c2_i32_5 = arith.constant 2 : i32
    %13 = tpu.dynamic_rotate %11 by %c2_i32_5 dim 1 : vector<1x128xf32>, i32 -> vector<1x128xf32>
    %c1_i32_6 = arith.constant 1 : i32
    %14 = tpu.dynamic_rotate %11 by %c1_i32_6 dim 1 : vector<1x128xf32>, i32 -> vector<1x128xf32>
    %c127_i32_7 = arith.constant 127 : i32
    %15 = tpu.dynamic_rotate %11 by %c127_i32_7 dim 1 : vector<1x128xf32>, i32 -> vector<1x128xf32>
    %c126_i32_8 = arith.constant 126 : i32
    %16 = tpu.dynamic_rotate %11 by %c126_i32_8 dim 1 : vector<1x128xf32>, i32 -> vector<1x128xf32>
    %17 = tpu.concatenate %13, %14, %11, %15, %16 in 0 : vector<1x128xf32>, vector<1x128xf32>, vector<1x128xf32>, vector<1x128xf32>, vector<1x128xf32> -> vector<5x128xf32>
    %18 = tpu.concatenate %12, %17 in 0 : vector<3x128xf32>, vector<5x128xf32> -> vector<8x128xf32>
    %c0_9 = arith.constant 0 : index
    %c0_10 = arith.constant 0 : index
    %19 = vector.load %arg4[%c0_9, %c0_10] : memref<4x8xf32, #tpu.memory_space<vmem>>, vector<4x8xf32>
    %cst_11 = arith.constant dense<0.000000e+00> : vector<4x128xf32>
    %20 = tpu.matmul %19, %18, %cst_11 {dimension_numbers = #tpu.dot_dimension_numbers<[1], [0], [0], [1], [0, 0, 1, 1], [], []>} : vector<4x8xf32>, vector<8x128xf32>, vector<4x128xf32> -> vector<4x128xf32>
    %21 = math.tanh %20 : vector<4x128xf32>
    %22 = vector.broadcast %1 : vector<1x128xf32> to vector<4x128xf32>
    %23 = arith.mulf %21, %22 : vector<4x128xf32>
    %c2_i32_12 = arith.constant 2 : i32
    %24 = tpu.dynamic_rotate %23 by %c2_i32_12 dim 1 : vector<4x128xf32>, i32 -> vector<4x128xf32>
    %c1_i32_13 = arith.constant 1 : i32
    %25 = tpu.dynamic_rotate %23 by %c1_i32_13 dim 1 : vector<4x128xf32>, i32 -> vector<4x128xf32>
    %c127_i32_14 = arith.constant 127 : i32
    %26 = tpu.dynamic_rotate %23 by %c127_i32_14 dim 1 : vector<4x128xf32>, i32 -> vector<4x128xf32>
    %c126_i32_15 = arith.constant 126 : i32
    %27 = tpu.dynamic_rotate %23 by %c126_i32_15 dim 1 : vector<4x128xf32>, i32 -> vector<4x128xf32>
    %28 = tpu.concatenate %24, %25, %23, %26, %27 in 0 : vector<4x128xf32>, vector<4x128xf32>, vector<4x128xf32>, vector<4x128xf32>, vector<4x128xf32> -> vector<20x128xf32>
    %c0_16 = arith.constant 0 : index
    %c0_17 = arith.constant 0 : index
    %29 = vector.load %arg5[%c0_16, %c0_17] : memref<8x20xf32, #tpu.memory_space<vmem>>, vector<8x20xf32>
    %cst_18 = arith.constant dense<0.000000e+00> : vector<8x128xf32>
    %30 = tpu.matmul %29, %28, %cst_18 {dimension_numbers = #tpu.dot_dimension_numbers<[1], [0], [0], [1], [0, 0, 1, 1], [], []>} : vector<8x20xf32>, vector<20x128xf32>, vector<8x128xf32> -> vector<8x128xf32>
    %31 = vector.broadcast %1 : vector<1x128xf32> to vector<8x128xf32>
    %32 = arith.mulf %30, %31 : vector<8x128xf32>
    %c3_i32 = arith.constant 3 : i32
    %33 = tpu.dynamic_rotate %32 by %c3_i32 dim 1 : vector<8x128xf32>, i32 -> vector<8x128xf32>
    %c2_i32_19 = arith.constant 2 : i32
    %34 = tpu.dynamic_rotate %32 by %c2_i32_19 dim 1 : vector<8x128xf32>, i32 -> vector<8x128xf32>
    %c1_i32_20 = arith.constant 1 : i32
    %35 = tpu.dynamic_rotate %32 by %c1_i32_20 dim 1 : vector<8x128xf32>, i32 -> vector<8x128xf32>
    %c127_i32_21 = arith.constant 127 : i32
    %36 = tpu.dynamic_rotate %32 by %c127_i32_21 dim 1 : vector<8x128xf32>, i32 -> vector<8x128xf32>
    %c126_i32_22 = arith.constant 126 : i32
    %37 = tpu.dynamic_rotate %32 by %c126_i32_22 dim 1 : vector<8x128xf32>, i32 -> vector<8x128xf32>
    %c125_i32 = arith.constant 125 : i32
    %38 = tpu.dynamic_rotate %32 by %c125_i32 dim 1 : vector<8x128xf32>, i32 -> vector<8x128xf32>
    %39 = tpu.concatenate %33, %34, %35, %32, %36, %37, %38 in 0 : vector<8x128xf32>, vector<8x128xf32>, vector<8x128xf32>, vector<8x128xf32>, vector<8x128xf32>, vector<8x128xf32>, vector<8x128xf32> -> vector<56x128xf32>
    %c0_23 = arith.constant 0 : index
    %c0_24 = arith.constant 0 : index
    %40 = vector.load %arg6[%c0_23, %c0_24] : memref<4x56xf32, #tpu.memory_space<vmem>>, vector<4x56xf32>
    %cst_25 = arith.constant dense<0.000000e+00> : vector<4x128xf32>
    %41 = tpu.matmul %40, %39, %cst_25 {dimension_numbers = #tpu.dot_dimension_numbers<[1], [0], [0], [1], [0, 0, 1, 1], [], []>} : vector<4x56xf32>, vector<56x128xf32>, vector<4x128xf32> -> vector<4x128xf32>
    %42 = arith.negf %41 : vector<4x128xf32>
    %43 = math.exp %42 : vector<4x128xf32>
    %cst_26 = arith.constant 1.000000e+00 : f32
    %44 = vector.broadcast %cst_26 : f32 to vector<4x128xf32>
    %45 = arith.addf %44, %43 : vector<4x128xf32>
    %46 = arith.divf %44, %45 : vector<4x128xf32>
    %47 = math.tanh %41 : vector<4x128xf32>
    %48 = arith.mulf %46, %47 : vector<4x128xf32>
    %49 = arith.addf %48, %21 : vector<4x128xf32>
    %50 = arith.addf %0, %49 : vector<4x128xf32>
    %c0_27 = arith.constant 0 : index
    %c0_28 = arith.constant 0 : index
    %51 = vector.load %arg7[%c0_27, %c0_28] : memref<4x128xf32, #tpu.memory_space<vmem>>, vector<4x128xf32>
    tpu.vector_store %arg7[%c0_27, %c0_28], %50 {strides = array<i32>} : memref<4x128xf32, #tpu.memory_space<vmem>>, vector<4x128xf32>,
    return
  }
  func.func @transform_0(%arg0: i32) -> (i32, i32) {
    %c0_i32 = arith.constant 0 : i32
    %c0_i32_0 = arith.constant 0 : i32
    return %c0_i32, %arg0 : i32, i32
  }
  func.func @transform_1(%arg0: i32) -> (i32, i32) {
    %c0_i32 = arith.constant 0 : i32
    %c0_i32_0 = arith.constant 0 : i32
    return %c0_i32, %arg0 : i32, i32
  }
  func.func @transform_2(%arg0: i32) -> (i32, i32) {
    %c0_i32 = arith.constant 0 : i32
    %c0_i32_0 = arith.constant 0 : i32
    %c0_i32_1 = arith.constant 0 : i32
    return %c0_i32, %c0_i32_0 : i32, i32
  }
  func.func @transform_3(%arg0: i32) -> (i32, i32) {
    %c0_i32 = arith.constant 0 : i32
    %c0_i32_0 = arith.constant 0 : i32
    %c0_i32_1 = arith.constant 0 : i32
    return %c0_i32, %c0_i32_0 : i32, i32
  }
  func.func @transform_4(%arg0: i32) -> (i32, i32) {
    %c0_i32 = arith.constant 0 : i32
    %c0_i32_0 = arith.constant 0 : i32
    %c0_i32_1 = arith.constant 0 : i32
    return %c0_i32, %c0_i32_0 : i32, i32
  }
  func.func @transform_5(%arg0: i32) -> (i32, i32) {
    %c0_i32 = arith.constant 0 : i32
    %c0_i32_0 = arith.constant 0 : i32
    %c0_i32_1 = arith.constant 0 : i32
    return %c0_i32, %c0_i32_0 : i32, i32
  }
  func.func @transform_6(%arg0: i32) -> (i32, i32) {
    %c0_i32 = arith.constant 0 : i32
    %c0_i32_0 = arith.constant 0 : i32
    return %c0_i32, %arg0 : i32, i32
  }
}

</mosaic_0001>

<llo_original>
// kernel: tpu_custom_call.1
$region0: #{tpu_custom_call.1}
  #allocation0 [shape = 'u32[]', space=smem, size = 0x4, offset = 0x4, fixed_abs, tag = 'smem constant byte address 0x4 - core index']
  #allocation1 [shape = 'u32[144,128]{1,0:T(1,128)}', space=vmem, size = 0x12000, scoped, tag = 'internal scratch']
  %s0 = inlined_call_operand.hbm [shape: f32[1,256], index: 0, kind: input, shape index: {}]
  %s1 = inlined_call_operand.hbm [shape: f32[4,256], index: 1, kind: input, shape index: {}]
  %s2 = inlined_call_operand.vmem [shape: f32[4,20], index: 2, kind: input, shape index: {}]
  %s3 = inlined_call_operand.hbm [shape: f32[4,8], index: 3, kind: input, shape index: {}]
  %s4 = inlined_call_operand.vmem [shape: f32[8,20], index: 4, kind: input, shape index: {}]
  %s5 = inlined_call_operand.vmem [shape: f32[4,56], index: 5, kind: input, shape index: {}]
  %s6 = inlined_call_operand.hbm [shape: f32[4,256], index: 6, kind: output, shape index: {}]
  %s7 = sld [smem:[#allocation0]]
  $region69: #{tpu_custom_call.1} parent=0
    _
  %s9 = ssub.s32 1, %s7
  %s10 = scalar_select 0, %s9, %s7
  $region1: #{tpu_custom_call.1} parent=0
    #allocation2 [shape = 'u8[1024]{0}', space=vmem, size = 0x400, scoped, tag = 'input window, operand 0']
    #allocation3 [shape = 's32[2]{0}', space=sflag, size = 0x8, scoped, tag = 'scoped memory for tpu_custom_call.1']
    #allocation4 [shape = 's32[2]{0}', space=sflag, size = 0x8, scoped, tag = 'scoped memory for tpu_custom_call.1']
    #allocation5 [shape = 'u8[4096]{0}', space=vmem, size = 0x1000, scoped, tag = 'input window, operand 1']
    #allocation6 [shape = 's32[2]{0}', space=sflag, size = 0x8, scoped, tag = 'scoped memory for tpu_custom_call.1']
    #allocation7 [shape = 'u8[2048]{0}', space=vmem, size = 0x800, scoped, tag = 'input window, operand 3, single buffered']
    #allocation8 [shape = 'u8[4096]{0}', space=vmem, size = 0x1000, scoped, tag = 'output window, operand 0']
    %11 = vsyncpa [#allocation3], 0
    %s12 = scalar_lea.sflag [#allocation3], 1
    %13 = vsyncpa %s12, 0
    %14 = vsyncpa [#allocation6], 0
    %s15 = scalar_lea.sflag [#allocation6], 1
    %16 = vsyncpa %s15, 0
    %17 = vsyncpa [#allocation4], 0
    %s18 = scalar_lea.sflag [#allocation4], 1
    %19 = vsyncpa %s18, 0
    loop: start=0, step=1, limit=4
    $region2: #{tpu_custom_call.1} parent=1 // loop_pre_header
      _
    $region3: #{tpu_custom_call.1} parent=1 // loop_header
      %s21 = sphi 0, %s25
      %p22 = scmp.ge.s32.totalorder %s21, 4
      %s31 = sphi 0, %s33
      %s34 = sphi 0, %s31
      %s35 = sphi 0, %s34
      %s51 = sphi 0, %s35
      %s57 = sphi 0, %s59
      %s60 = sphi 0, %s57
      %s61 = sphi 0, %s60
      %s77 = sphi 0, %s61
      %s81 = sphi 0, %s81
      %s83 = sphi 0, %s81
      %s84 = sphi 0, %s83
      %s98 = sphi 0, %s84
      %s102 = sphi 0, %s102
      %s104 = sphi 0, %s102
      %s105 = sphi 0, %s104
      %s119 = sphi 0, %s105
      %s123 = sphi 0, %s123
      %s125 = sphi 0, %s123
      %s126 = sphi 0, %s125
      %s140 = sphi 0, %s126
      %s144 = sphi 0, %s144
      %s146 = sphi 0, %s144
      %s147 = sphi 0, %s146
      %s161 = sphi 0, %s147
      %s167 = sphi 0, %s169
      %s170 = sphi 0, %s167
      %s171 = sphi 0, %s170
      %s187 = sphi 0, %s171
    $region4: #{tpu_custom_call.1} parent=1 // loop_header_branch
      %24 = sbr.rel (%p22) target = $region8
    $region5: #{tpu_custom_call.1} parent=1 // loop_body
      %s26 = ssub.s32 %s21, 1
      %s27 = ssub.s32 %s21, 2
      %s28 = sadd.s32 %s21, 1
      %s29 = ssub.s32 %s21, %s28
      %p30 = scmp.eq.s32.totalorder %s29, 0
      %s32 = sadd.s32 %s31, 1
      %s33 = scalar_select %p30, %s31, %s32
      %p36 = pneg %p30
      %p37 = scmp.eq.s32.totalorder %s21, 1
      %p38 = por %p36, %p37
      %p39 = scmp.ne.s32.totalorder %s31, %s34
      %p40 = scmp.eq.s32.totalorder %s21, 0
      %p41 = por %p39, %p40
      %p42 = scmp.ne.s32.totalorder %s31, %s34
      %p43 = scmp.eq.s32.totalorder %s26, 1
      %p44 = por %p42, %p43
      %p45 = scmp.ne.s32.totalorder %s34, %s35
      %p46 = scmp.eq.s32.totalorder %s26, 0
      %p47 = por %p45, %p46
      %p48 = scmp.ne.s32.totalorder %s34, %s35
      %p49 = scmp.eq.s32.totalorder %s27, 1
      %p50 = por %p48, %p49
      %p52 = scmp.ne.s32.totalorder %s35, %s51
      %p53 = scmp.eq.s32.totalorder %s27, 0
      %p54 = por %p52, %p53
      %s55 = ssub.s32 %s21, %s28
      %p56 = scmp.eq.s32.totalorder %s55, 0
      %s58 = sadd.s32 %s57, 1
      %s59 = scalar_select %p56, %s57, %s58
      %p62 = pneg %p56
      %p63 = scmp.eq.s32.totalorder %s21, 1
      %p64 = por %p62, %p63
      %p65 = scmp.ne.s32.totalorder %s57, %s60
      %p66 = scmp.eq.s32.totalorder %s21, 0
      %p67 = por %p65, %p66
      %p68 = scmp.ne.s32.totalorder %s57, %s60
      %p69 = scmp.eq.s32.totalorder %s26, 1
      %p70 = por %p68, %p69
      %p71 = scmp.ne.s32.totalorder %s60, %s61
      %p72 = scmp.eq.s32.totalorder %s26, 0
      %p73 = por %p71, %p72
      %p74 = scmp.ne.s32.totalorder %s60, %s61
      %p75 = scmp.eq.s32.totalorder %s27, 1
      %p76 = por %p74, %p75
      %p78 = scmp.ne.s32.totalorder %s61, %s77
      %p79 = scmp.eq.s32.totalorder %s27, 0
      %p80 = por %p78, %p79
      %s82 = sadd.s32 %s81, 1
      %p85 = scmp.eq.s32.totalorder %s21, 1
      %p86 = scmp.ne.s32.totalorder %s81, %s83
      %p87 = scmp.eq.s32.totalorder %s21, 0
      %p88 = por %p86, %p87
      %p89 = scmp.ne.s32.totalorder %s81, %s83
      %p90 = scmp.eq.s32.totalorder %s26, 1
      %p91 = por %p89, %p90
      %p92 = scmp.ne.s32.totalorder %s83, %s84
      %p93 = scmp.eq.s32.totalorder %s26, 0
      %p94 = por %p92, %p93
      %p95 = scmp.ne.s32.totalorder %s83, %s84
      %p96 = scmp.eq.s32.totalorder %s27, 1
      %p97 = por %p95, %p96
      %p99 = scmp.ne.s32.totalorder %s84, %s98
      %p100 = scmp.eq.s32.totalorder %s27, 0
      %p101 = por %p99, %p100
      %s103 = sadd.s32 %s102, 1
      %p106 = scmp.eq.s32.totalorder %s21, 1
      %p107 = scmp.ne.s32.totalorder %s102, %s104
      %p108 = scmp.eq.s32.totalorder %s21, 0
      %p109 = por %p107, %p108
      %p110 = scmp.ne.s32.totalorder %s102, %s104
      %p111 = scmp.eq.s32.totalorder %s26, 1
      %p112 = por %p110, %p111
      %p113 = scmp.ne.s32.totalorder %s104, %s105
      %p114 = scmp.eq.s32.totalorder %s26, 0
      %p115 = por %p113, %p114
      %p116 = scmp.ne.s32.totalorder %s104, %s105
      %p117 = scmp.eq.s32.totalorder %s27, 1
      %p118 = por %p116, %p117
      %p120 = scmp.ne.s32.totalorder %s105, %s119
      %p121 = scmp.eq.s32.totalorder %s27, 0
      %p122 = por %p120, %p121
      %s124 = sadd.s32 %s123, 1
      %p127 = scmp.eq.s32.totalorder %s21, 1
      %p128 = scmp.ne.s32.totalorder %s123, %s125
      %p129 = scmp.eq.s32.totalorder %s21, 0
      %p130 = por %p128, %p129
      %p131 = scmp.ne.s32.totalorder %s123, %s125
      %p132 = scmp.eq.s32.totalorder %s26, 1
      %p133 = por %p131, %p132
      %p134 = scmp.ne.s32.totalorder %s125, %s126
      %p135 = scmp.eq.s32.totalorder %s26, 0
      %p136 = por %p134, %p135
      %p137 = scmp.ne.s32.totalorder %s125, %s126
      %p138 = scmp.eq.s32.totalorder %s27, 1
      %p139 = por %p137, %p138
      %p141 = scmp.ne.s32.totalorder %s126, %s140
      %p142 = scmp.eq.s32.totalorder %s27, 0
      %p143 = por %p141, %p142
      %s145 = sadd.s32 %s144, 1
      %p148 = scmp.eq.s32.totalorder %s21, 1
      %p149 = scmp.ne.s32.totalorder %s144, %s146
      %p150 = scmp.eq.s32.totalorder %s21, 0
      %p151 = por %p149, %p150
      %p152 = scmp.ne.s32.totalorder %s144, %s146
      %p153 = scmp.eq.s32.totalorder %s26, 1
      %p154 = por %p152, %p153
      %p155 = scmp.ne.s32.totalorder %s146, %s147
      %p156 = scmp.eq.s32.totalorder %s26, 0
      %p157 = por %p155, %p156
      %p158 = scmp.ne.s32.totalorder %s146, %s147
      %p159 = scmp.eq.s32.totalorder %s27, 1
      %p160 = por %p158, %p159
      %p162 = scmp.ne.s32.totalorder %s147, %s161
      %p163 = scmp.eq.s32.totalorder %s27, 0
      %p164 = por %p162, %p163
      %s165 = ssub.s32 %s21, %s28
      %p166 = scmp.eq.s32.totalorder %s165, 0
      %s168 = sadd.s32 %s167, 1
      %s169 = scalar_select %p166, %s167, %s168
      %p172 = pneg %p166
      %p173 = scmp.eq.s32.totalorder %s21, 1
      %p174 = por %p172, %p173
      %p175 = scmp.ne.s32.totalorder %s167, %s170
      %p176 = scmp.eq.s32.totalorder %s21, 0
      %p177 = por %p175, %p176
      %p178 = scmp.ne.s32.totalorder %s167, %s170
      %p179 = scmp.eq.s32.totalorder %s26, 1
      %p180 = por %p178, %p179
      %p181 = scmp.ne.s32.totalorder %s170, %s171
      %p182 = scmp.eq.s32.totalorder %s26, 0
      %p183 = por %p181, %p182
      %p184 = scmp.ne.s32.totalorder %s170, %s171
      %p185 = scmp.eq.s32.totalorder %s27, 1
      %p186 = por %p184, %p185
      %p188 = scmp.ne.s32.totalorder %s171, %s187
      %p189 = scmp.eq.s32.totalorder %s27, 0
      %p190 = por %p188, %p189
      %p191 = scmp.le.s32.totalorder 1, %s21
      %p192 = scmp.lt.s32.totalorder %s21, 3
      %p193 = pnand %p191, %p192
      %p194 = pneg %p193
      // Predicated region
      $region9: #{tpu_custom_call.1} parent=5 // pred_check
        _
      $region10: #{tpu_custom_call.1} parent=5 // pred_check_branch
        %196 = sbr.rel (%p193) target = $region12
      $region11: #{tpu_custom_call.1} parent=5 // pred_region
        %s197 = ssub.s32 %s21, 1
        // Predicated region
        $region13: #{tpu_custom_call.1} parent=11 // pred_check
          %p198 = pneg %p94
        $region14: #{tpu_custom_call.1} parent=11 // pred_check_branch
          %200 = sbr.rel (%p198) target = $region16
        $region15: #{tpu_custom_call.1} parent=11 // pred_region
          _
        $region16: #{tpu_custom_call.1} parent=11 // pred_fallthru
          _
        // Predicated region
        $region17: #{tpu_custom_call.1} parent=11 // pred_check
          %p201 = pneg %p115
        $region18: #{tpu_custom_call.1} parent=11 // pred_check_branch
          %203 = sbr.rel (%p201) target = $region20
        $region19: #{tpu_custom_call.1} parent=11 // pred_region
          %s205 = ssub.s32 64, 64
          %206 = vsyncadd [#allocation6], %s205
          %s208 = sshll.u32 [#allocation7], 4
          %s209 = int_to_ptr.vmem [resolvable:$true] %s208
          %211 = dma.hbm_to_vmem [thread:$0]  %s3, 64, %s209, [#allocation6]
        $region20: #{tpu_custom_call.1} parent=11 // pred_fallthru
          _
        // Predicated region
        $region21: #{tpu_custom_call.1} parent=11 // pred_check
          %p212 = pneg %p136
        $region22: #{tpu_custom_call.1} parent=11 // pred_check_branch
          %214 = sbr.rel (%p212) target = $region24
        $region23: #{tpu_custom_call.1} parent=11 // pred_region
          _
        $region24: #{tpu_custom_call.1} parent=11 // pred_fallthru
          _
        // Predicated region
        $region25: #{tpu_custom_call.1} parent=11 // pred_check
          %p215 = pneg %p157
        $region26: #{tpu_custom_call.1} parent=11 // pred_check_branch
          %217 = sbr.rel (%p215) target = $region28
        $region27: #{tpu_custom_call.1} parent=11 // pred_region
          _
        $region28: #{tpu_custom_call.1} parent=11 // pred_fallthru
          _
      $region12: #{tpu_custom_call.1} parent=5 // pred_fallthru
        _
      %p218 = scmp.lt.s32.totalorder %s21, 2
      // Predicated region
      $region29: #{tpu_custom_call.1} parent=5 // pred_check
        %p219 = pneg %p218
      $region30: #{tpu_custom_call.1} parent=5 // pred_check_branch
        %221 = sbr.rel (%p219) target = $region32
      $region31: #{tpu_custom_call.1} parent=5 // pred_region
        // Predicated region
        $region33: #{tpu_custom_call.1} parent=31 // pred_check
          %p222 = pneg %p41
        $region34: #{tpu_custom_call.1} parent=31 // pred_check_branch
          %224 = sbr.rel (%p222) target = $region36
        $region35: #{tpu_custom_call.1} parent=31 // pred_region
          %s225 = sand.u32 %s31, 1
          %s226 = scalar_lea.sflag [#allocation3], %s225
          %s227 = sand.u32 %s31, 1
          %s228 = scalar_lea.vmem [#allocation2], %s227
          %s230 = ssub.s32 16, 16
          %231 = vsyncadd %s226, %s230
          %s232 = smul.addr %s21, 16
          %s233 = scalar_lea.hbm %s0, %s232
          %s235 = sshll.u32 %s228, 4
          %s236 = int_to_ptr.vmem [resolvable:$true] %s235
          %238 = dma.hbm_to_vmem [thread:$0]  %s233, 16, %s236, %s226
        $region36: #{tpu_custom_call.1} parent=31 // pred_fallthru
          _
        // Predicated region
        $region37: #{tpu_custom_call.1} parent=31 // pred_check
          %p239 = pneg %p67
        $region38: #{tpu_custom_call.1} parent=31 // pred_check_branch
          %241 = sbr.rel (%p239) target = $region40
        $region39: #{tpu_custom_call.1} parent=31 // pred_region
          %s242 = sand.u32 %s21, 1
          %s243 = scalar_lea.sflag [#allocation6], %s242
          %s244 = sand.u32 %s57, 1
          %s245 = smul.addr %s244, 4
          %s246 = scalar_lea.vmem [#allocation5], %s245
          %s248 = ssub.s32 64, 64
          %249 = vsyncadd %s243, %s248
          %s250 = smul.addr %s21, 64
          %s251 = scalar_lea.hbm %s1, %s250
          %s253 = sshll.u32 %s246, 4
          %s254 = int_to_ptr.vmem [resolvable:$true] %s253
          %256 = dma.hbm_to_vmem [thread:$0]  %s251, 64, %s254, %s243
        $region40: #{tpu_custom_call.1} parent=31 // pred_fallthru
          _
      $region32: #{tpu_custom_call.1} parent=5 // pred_fallthru
        _
      %p257 = scmp.le.s32.totalorder 1, %s21
      %p258 = scmp.lt.s32.totalorder %s21, 3
      %p259 = pnand %p257, %p258
      %p260 = pneg %p259
      // Predicated region
      $region41: #{tpu_custom_call.1} parent=5 // pred_check
        _
      $region42: #{tpu_custom_call.1} parent=5 // pred_check_branch
        %262 = sbr.rel (%p259) target = $region44
      $region43: #{tpu_custom_call.1} parent=5 // pred_region
        %s263 = ssub.s32 %s21, 1
        %s264 = sand.u32 %s34, 1
        %s265 = scalar_lea.sflag [#allocation3], %s264
        %s266 = sand.u32 %s34, 1
        %s267 = scalar_lea.vmem [#allocation2], %s266
        // Predicated region
        $region45: #{tpu_custom_call.1} parent=43 // pred_check
          %p268 = pneg %p47
        $region46: #{tpu_custom_call.1} parent=43 // pred_check_branch
          %270 = sbr.rel (%p268) target = $region48
        $region47: #{tpu_custom_call.1} parent=43 // pred_region
          %271 = dma.done %s265, 16
        $region48: #{tpu_custom_call.1} parent=43 // pred_fallthru
          _
        %s272 = sand.u32 %s26, 1
        %s273 = scalar_lea.sflag [#allocation6], %s272
        %s274 = sand.u32 %s60, 1
        %s275 = smul.addr %s274, 4
        %s276 = scalar_lea.vmem [#allocation5], %s275
        // Predicated region
        $region49: #{tpu_custom_call.1} parent=43 // pred_check
          %p277 = pneg %p73
        $region50: #{tpu_custom_call.1} parent=43 // pred_check_branch
          %279 = sbr.rel (%p277) target = $region52
        $region51: #{tpu_custom_call.1} parent=43 // pred_region
          %280 = dma.done %s273, 64
        $region52: #{tpu_custom_call.1} parent=43 // pred_fallthru
          _
        // Predicated region
        $region53: #{tpu_custom_call.1} parent=43 // pred_check
          %p281 = pneg %p115
        $region54: #{tpu_custom_call.1} parent=43 // pred_check_branch
          %283 = sbr.rel (%p281) target = $region56
        $region55: #{tpu_custom_call.1} parent=43 // pred_region
          %284 = dma.done [#allocation6], 64
        $region56: #{tpu_custom_call.1} parent=43 // pred_fallthru
          _
        %s285 = sand.u32 %s34, 1
        %s286 = scalar_lea.sflag [#allocation3], %s285
        %s287 = sand.u32 %s34, 1
        %s288 = scalar_lea.vmem [#allocation2], %s287
        %p289 = pneg %p47
        %p290 = pneg %p44
        %s291 = sand.u32 %s26, 1
        %s292 = scalar_lea.sflag [#allocation6], %s291
        %s293 = sand.u32 %s60, 1
        %s294 = smul.addr %s293, 4
        %s295 = scalar_lea.vmem [#allocation5], %s294
        %p296 = pneg %p73
        %p297 = pneg %p70
        %p298 = pneg %p94
        %p299 = pneg %p91
        %p300 = pneg %p115
        %p301 = pneg %p112
        %p302 = pneg %p136
        %p303 = pneg %p133
        %p304 = pneg %p157
        %p305 = pneg %p154
        %p306 = pneg %p183
        %p307 = pneg %p180
        %s308 = sand.u32 %s170, 1
        %s309 = scalar_lea.sflag [#allocation4], %s308
        %s310 = sand.u32 %s170, 1
        %s311 = smul.addr %s310, 4
        %s312 = scalar_lea.vmem [#allocation8], %s311
        %v313 = vld [vmem:[%s276] sm:$0xf]
        %v314 = vld [vmem:[%s267] sm:$0x1]
        %315 = vrot.lane.b32.xlu0 %v313, 2
        %v316 = vpop.permute.xlu0 %315
        %317 = vrot.lane.b32.xlu0 %v313, 1
        %v318 = vpop.permute.xlu0 %317
        %319 = vrot.lane.b32.xlu0 %v313, 127
        %v320 = vpop.permute.xlu0 %319
        %321 = vrot.lane.b32.xlu0 %v313, 126
        %v322 = vpop.permute.xlu0 %321
        %v324 = vrot.slane %v318, 4
        %v327 = vrot.slane %v320, 4
        %vm329 = vcmask 1043456
        %v330 = vsel %vm329, %v316, %v324
        %v331 = vsel %vm329, %v313, %v327
        %v332 = vld [vmem:[%s2] sm:$0xf]
        %vm333 = vcmask 162816
        %v335 = vsel %vm333, %v332, 0
        %v338 = vsel %vm329, %v322, 0
        %340 = vmatprep.subr.mxu0 0.0
        %341 = vmatpush1.msra.mxu0 %v330
        %342 = vmatprep.subr.mxu0 0.0
        %343 = vmatpush1.msra.mxu0 %v331
        %344 = vmatprep.subr.mxu0 0.0
        %345 = vmatpush1.msra.mxu0 %v338
        %346 = vmatprep.subr.mxu0 0.0
        %347 = vmatpush1.msra.mxu0 0.0
        %348 = vmatprep.subr.mxu0 0.0
        %349 = vmatpush1.msra.mxu0 0.0
        %350 = vmatprep.subr.mxu0 0.0
        %351 = vmatpush1.msra.mxu0 0.0
        %352 = vmatprep.subr.mxu0 0.0
        %353 = vmatpush1.msra.mxu0 0.0
        %354 = vmatprep.subr.mxu0 0.0
        %355 = vmatpush1.msra.mxu0 0.0
        %356 = vmatprep.subr.mxu0 0.0
        %357 = vmatpush1.msra.mxu0 0.0
        %358 = vmatprep.subr.mxu0 0.0
        %359 = vmatpush1.msra.mxu0 0.0
        %360 = vmatprep.subr.mxu0 0.0
        %361 = vmatpush1.msra.mxu0 0.0
        %362 = vmatprep.subr.mxu0 0.0
        %363 = vmatpush1.msra.mxu0 0.0
        %364 = vmatprep.subr.mxu0 0.0
        %365 = vmatpush1.msra.mxu0 0.0
        %366 = vmatprep.subr.mxu0 0.0
        %367 = vmatpush1.msra.mxu0 0.0
        %368 = vmatprep.subr.mxu0 0.0
        %369 = vmatpush1.msra.mxu0 0.0
        %370 = vmatprep.subr.mxu0 0.0
        %371 = vmatpush1.msra.mxu0 0.0
        %372 = vmatprep.subr.mxu0 0.0
        %373 = vmatpush1.msra.mxu0 0.0
        %374 = vmatprep.subr.mxu0 0.0
        %375 = vmatpush1.msra.mxu0 0.0
        %376 = vmatprep.subr.mxu0 0.0
        %377 = vmatpush1.msra.mxu0 0.0
        %378 = vmatprep.subr.mxu0 0.0
        %379 = vmatpush1.msra.mxu0 0.0
        %380 = vmatprep.subr.mxu0 0.0
        %381 = vmatpush1.msra.mxu0 0.0
        %382 = vmatprep.subr.mxu0 0.0
        %383 = vmatpush1.msra.mxu0 0.0
        %384 = vmatprep.subr.mxu0 0.0
        %385 = vmatpush1.msra.mxu0 0.0
        %386 = vmatprep.subr.mxu0 0.0
        %387 = vmatpush1.msra.mxu0 0.0
        %388 = vmatprep.subr.mxu0 0.0
        %389 = vmatpush1.msra.mxu0 0.0
        %390 = vmatprep.subr.mxu0 0.0
        %391 = vmatpush1.msra.mxu0 0.0
        %392 = vmatprep.subr.mxu0 0.0
        %393 = vmatpush1.msra.mxu0 0.0
        %394 = vmatprep.subr.mxu0 0.0
        %395 = vmatpush1.msra.mxu0 0.0
        %396 = vmatprep.subr.mxu0 0.0
        %397 = vmatpush1.msra.mxu0 0.0
        %398 = vmatprep.subr.mxu0 0.0
        %399 = vmatpush1.msra.mxu0 0.0
        %400 = vmatprep.subr.mxu0 0.0
        %401 = vmatpush1.msra.mxu0 0.0
        %402 = vmatprep.subr.mxu0 0.0
        %403 = vmatpush1.msra.mxu0 0.0
        %404 = vmatprep.mubr.f32.mxu0 0.0
        %405 = vmatmul.mubr.f32.gmra.mrb[0].mxu0 %v335
        %v406 = vpop.f32.mrb[0].mxu0
        %v407 = vadd.f32 0.0, %v406
        %v408 = vpop.f32.mrb[0].mxu0
        %409 = vdwg.mxu0
        %v410 = vtanh.pop %v407
        %v412 = vlaneseq
        %v413 = vshrl.u32 %v412, 7
        %v414 = vsub.s32 0, %v413
        %v415 = vrot.slane %v314, %v414
        %v417 = vmul.f32 %v410, %v415
        %v419 = vrot.slane %v417, 3
        %421 = vrot.lane.b32.xlu0 %v419, 2
        %v422 = vpop.permute.xlu0 %421
        %423 = vrot.lane.b32.xlu0 %v419, 1
        %v424 = vpop.permute.xlu0 %423
        %425 = vrot.lane.b32.xlu0 %v419, 127
        %v426 = vpop.permute.xlu0 %425
        %427 = vrot.lane.b32.xlu0 %v419, 126
        %v428 = vpop.permute.xlu0 %427
        %v430 = vrot.slane %v424, 7
        %v432 = vrot.slane %v417, 1
        %v435 = vrot.slane %v426, 5
        %v438 = vrot.slane %v428, 4
        %vm440 = vcmask 1040384
        %v441 = vsel %vm440, %v422, %v430
        %vm442 = vcmask 1041408
        %v443 = vsel %vm442, %v441, %v432
        %vm444 = vcmask 1042432
        %v445 = vsel %vm444, %v443, %v435
        %v446 = vsel %vm329, %v445, %v438
        %v448 = vrot.slane %v446, 5
        %v450 = vsel %vm444, %v410, %v448
        %v451 = vld [vmem:[#allocation7] sm:$0xf]
        %vm452 = vcmask 64512
        %v454 = vsel %vm452, %v451, 0
        %456 = vmatprep.subr.mxu0 0.0
        %457 = vmatpush1.msra.mxu0 %v450
        %458 = vmatprep.subr.mxu0 0.0
        %459 = vmatpush1.msra.mxu0 0.0
        %460 = vmatprep.subr.mxu0 0.0
        %461 = vmatpush1.msra.mxu0 0.0
        %462 = vmatprep.subr.mxu0 0.0
        %463 = vmatpush1.msra.mxu0 0.0
        %464 = vmatprep.subr.mxu0 0.0
        %465 = vmatpush1.msra.mxu0 0.0
        %466 = vmatprep.subr.mxu0 0.0
        %467 = vmatpush1.msra.mxu0 0.0
        %468 = vmatprep.subr.mxu0 0.0
        %469 = vmatpush1.msra.mxu0 0.0
        %470 = vmatprep.subr.mxu0 0.0
        %471 = vmatpush1.msra.mxu0 0.0
        %472 = vmatprep.subr.mxu0 0.0
        %473 = vmatpush1.msra.mxu0 0.0
        %474 = vmatprep.subr.mxu0 0.0
        %475 = vmatpush1.msra.mxu0 0.0
        %476 = vmatprep.subr.mxu0 0.0
        %477 = vmatpush1.msra.mxu0 0.0
        %478 = vmatprep.subr.mxu0 0.0
        %479 = vmatpush1.msra.mxu0 0.0
        %480 = vmatprep.subr.mxu0 0.0
        %481 = vmatpush1.msra.mxu0 0.0
        %482 = vmatprep.subr.mxu0 0.0
        %483 = vmatpush1.msra.mxu0 0.0
        %484 = vmatprep.subr.mxu0 0.0
        %485 = vmatpush1.msra.mxu0 0.0
        %486 = vmatprep.subr.mxu0 0.0
        %487 = vmatpush1.msra.mxu0 0.0
        %488 = vmatprep.subr.mxu0 0.0
        %489 = vmatpush1.msra.mxu0 0.0
        %490 = vmatprep.subr.mxu0 0.0
        %491 = vmatpush1.msra.mxu0 0.0
        %492 = vmatprep.subr.mxu0 0.0
        %493 = vmatpush1.msra.mxu0 0.0
        %494 = vmatprep.subr.mxu0 0.0
        %495 = vmatpush1.msra.mxu0 0.0
        %496 = vmatprep.subr.mxu0 0.0
        %497 = vmatpush1.msra.mxu0 0.0
        %498 = vmatprep.subr.mxu0 0.0
        %499 = vmatpush1.msra.mxu0 0.0
        %500 = vmatprep.subr.mxu0 0.0
        %501 = vmatpush1.msra.mxu0 0.0
        %502 = vmatprep.subr.mxu0 0.0
        %503 = vmatpush1.msra.mxu0 0.0
        %504 = vmatprep.subr.mxu0 0.0
        %505 = vmatpush1.msra.mxu0 0.0
        %506 = vmatprep.subr.mxu0 0.0
        %507 = vmatpush1.msra.mxu0 0.0
        %508 = vmatprep.subr.mxu0 0.0
        %509 = vmatpush1.msra.mxu0 0.0
        %510 = vmatprep.subr.mxu0 0.0
        %511 = vmatpush1.msra.mxu0 0.0
        %512 = vmatprep.subr.mxu0 0.0
        %513 = vmatpush1.msra.mxu0 0.0
        %514 = vmatprep.subr.mxu0 0.0
        %515 = vmatpush1.msra.mxu0 0.0
        %516 = vmatprep.subr.mxu0 0.0
        %517 = vmatpush1.msra.mxu0 0.0
        %518 = vmatprep.subr.mxu0 0.0
        %519 = vmatpush1.msra.mxu0 0.0
        %520 = vmatprep.mubr.f32.mxu0 0.0
        %521 = vmatmul.mubr.f32.gmra.mrb[0].mxu0 %v454
        %v522 = vpop.f32.mrb[0].mxu0
        %v523 = vadd.f32 0.0, %v522
        %v524 = vpop.f32.mrb[0].mxu0
        %525 = vdwg.mxu0
        %v526 = vtanh.pop %v523
        %v527 = vmul.f32 %v526, %v415
        %528 = vrot.lane.b32.xlu0 %v527, 2
        %v529 = vpop.permute.xlu0 %528
        %530 = vrot.lane.b32.xlu0 %v527, 1
        %v531 = vpop.permute.xlu0 %530
        %532 = vrot.lane.b32.xlu0 %v527, 127
        %v533 = vpop.permute.xlu0 %532
        %534 = vrot.lane.b32.xlu0 %v527, 126
        %v535 = vpop.permute.xlu0 %534
        %v537 = vrot.slane %v531, 4
        %v540 = vrot.slane %v533, 4
        %v542 = vsel %vm329, %v529, %v537
        %v543 = vsel %vm329, %v527, %v540
        %v544 = vld [vmem:[%s4] sm:$0xff]
        %v546 = vsel %vm333, %v544, 0
        %v549 = vsel %vm329, %v535, 0
        %551 = vmatprep.subr.mxu0 0.0
        %552 = vmatpush1.msra.mxu0 %v542
        %553 = vmatprep.subr.mxu0 0.0
        %554 = vmatpush1.msra.mxu0 %v543
        %555 = vmatprep.subr.mxu0 0.0
        %556 = vmatpush1.msra.mxu0 %v549
        %557 = vmatprep.subr.mxu0 0.0
        %558 = vmatpush1.msra.mxu0 0.0
        %559 = vmatprep.subr.mxu0 0.0
        %560 = vmatpush1.msra.mxu0 0.0
        %561 = vmatprep.subr.mxu0 0.0
        %562 = vmatpush1.msra.mxu0 0.0
        %563 = vmatprep.subr.mxu0 0.0
        %564 = vmatpush1.msra.mxu0 0.0
        %565 = vmatprep.subr.mxu0 0.0
        %566 = vmatpush1.msra.mxu0 0.0
        %567 = vmatprep.subr.mxu0 0.0
        %568 = vmatpush1.msra.mxu0 0.0
        %569 = vmatprep.subr.mxu0 0.0
        %570 = vmatpush1.msra.mxu0 0.0
        %571 = vmatprep.subr.mxu0 0.0
        %572 = vmatpush1.msra.mxu0 0.0
        %573 = vmatprep.subr.mxu0 0.0
        %574 = vmatpush1.msra.mxu0 0.0
        %575 = vmatprep.subr.mxu0 0.0
        %576 = vmatpush1.msra.mxu0 0.0
        %577 = vmatprep.subr.mxu0 0.0
        %578 = vmatpush1.msra.mxu0 0.0
        %579 = vmatprep.subr.mxu0 0.0
        %580 = vmatpush1.msra.mxu0 0.0
        %581 = vmatprep.subr.mxu0 0.0
        %582 = vmatpush1.msra.mxu0 0.0
        %583 = vmatprep.subr.mxu0 0.0
        %584 = vmatpush1.msra.mxu0 0.0
        %585 = vmatprep.subr.mxu0 0.0
        %586 = vmatpush1.msra.mxu0 0.0
        %587 = vmatprep.subr.mxu0 0.0
        %588 = vmatpush1.msra.mxu0 0.0
        %589 = vmatprep.subr.mxu0 0.0
        %590 = vmatpush1.msra.mxu0 0.0
        %591 = vmatprep.subr.mxu0 0.0
        %592 = vmatpush1.msra.mxu0 0.0
        %593 = vmatprep.subr.mxu0 0.0
        %594 = vmatpush1.msra.mxu0 0.0
        %595 = vmatprep.subr.mxu0 0.0
        %596 = vmatpush1.msra.mxu0 0.0
        %597 = vmatprep.subr.mxu0 0.0
        %598 = vmatpush1.msra.mxu0 0.0
        %599 = vmatprep.subr.mxu0 0.0
        %600 = vmatpush1.msra.mxu0 0.0
        %601 = vmatprep.subr.mxu0 0.0
        %602 = vmatpush1.msra.mxu0 0.0
        %603 = vmatprep.subr.mxu0 0.0
        %604 = vmatpush1.msra.mxu0 0.0
        %605 = vmatprep.subr.mxu0 0.0
        %606 = vmatpush1.msra.mxu0 0.0
        %607 = vmatprep.subr.mxu0 0.0
        %608 = vmatpush1.msra.mxu0 0.0
        %609 = vmatprep.subr.mxu0 0.0
        %610 = vmatpush1.msra.mxu0 0.0
        %611 = vmatprep.subr.mxu0 0.0
        %612 = vmatpush1.msra.mxu0 0.0
        %613 = vmatprep.subr.mxu0 0.0
        %614 = vmatpush1.msra.mxu0 0.0
        %615 = vmatprep.mubr.f32.mxu0 0.0
        %616 = vmatmul.mubr.f32.gmra.mrb[0].mxu0 %v546
        %v617 = vpop.f32.mrb[0].mxu0
        %v618 = vadd.f32 0.0, %v617
        %v619 = vpop.f32.mrb[0].mxu0
        %620 = vdwg.mxu0
        %v621 = vmul.f32 %v618, %v415
        %622 = vrot.lane.b32.xlu0 %v621, 3
        %v623 = vpop.permute.xlu0 %622
        %624 = vrot.lane.b32.xlu0 %v621, 2
        %v625 = vpop.permute.xlu0 %624
        %626 = vrot.lane.b32.xlu0 %v621, 1
        %v627 = vpop.permute.xlu0 %626
        %628 = vrot.lane.b32.xlu0 %v621, 127
        %v629 = vpop.permute.xlu0 %628
        %630 = vrot.lane.b32.xlu0 %v621, 126
        %v631 = vpop.permute.xlu0 %630
        %632 = vrot.lane.b32.xlu0 %v621, 125
        %v633 = vpop.permute.xlu0 %632
        %v634 = vld [vmem:[%s5] sm:$0xf]
        %vm635 = vcmask 457728
        %v637 = vsel %vm635, %v634, 0
        %639 = vmatprep.subr.mxu0 0.0
        %640 = vmatpush1.msra.mxu0 %v623
        %641 = vmatprep.subr.mxu0 0.0
        %642 = vmatpush1.msra.mxu0 %v625
        %643 = vmatprep.subr.mxu0 0.0
        %644 = vmatpush1.msra.mxu0 %v627
        %645 = vmatprep.subr.mxu0 0.0
        %646 = vmatpush1.msra.mxu0 %v621
        %647 = vmatprep.subr.mxu0 0.0
        %648 = vmatpush1.msra.mxu0 %v629
        %649 = vmatprep.subr.mxu0 0.0
        %650 = vmatpush1.msra.mxu0 %v631
        %651 = vmatprep.subr.mxu0 0.0
        %652 = vmatpush1.msra.mxu0 %v633
        %653 = vmatprep.subr.mxu0 0.0
        %654 = vmatpush1.msra.mxu0 0.0
        %655 = vmatprep.subr.mxu0 0.0
        %656 = vmatpush1.msra.mxu0 0.0
        %657 = vmatprep.subr.mxu0 0.0
        %658 = vmatpush1.msra.mxu0 0.0
        %659 = vmatprep.subr.mxu0 0.0
        %660 = vmatpush1.msra.mxu0 0.0
        %661 = vmatprep.subr.mxu0 0.0
        %662 = vmatpush1.msra.mxu0 0.0
        %663 = vmatprep.subr.mxu0 0.0
        %664 = vmatpush1.msra.mxu0 0.0
        %665 = vmatprep.subr.mxu0 0.0
        %666 = vmatpush1.msra.mxu0 0.0
        %667 = vmatprep.subr.mxu0 0.0
        %668 = vmatpush1.msra.mxu0 0.0
        %669 = vmatprep.subr.mxu0 0.0
        %670 = vmatpush1.msra.mxu0 0.0
        %671 = vmatprep.subr.mxu0 0.0
        %672 = vmatpush1.msra.mxu0 0.0
        %673 = vmatprep.subr.mxu0 0.0
        %674 = vmatpush1.msra.mxu0 0.0
        %675 = vmatprep.subr.mxu0 0.0
        %676 = vmatpush1.msra.mxu0 0.0
        %677 = vmatprep.subr.mxu0 0.0
        %678 = vmatpush1.msra.mxu0 0.0
        %679 = vmatprep.subr.mxu0 0.0
        %680 = vmatpush1.msra.mxu0 0.0
        %681 = vmatprep.subr.mxu0 0.0
        %682 = vmatpush1.msra.mxu0 0.0
        %683 = vmatprep.subr.mxu0 0.0
        %684 = vmatpush1.msra.mxu0 0.0
        %685 = vmatprep.subr.mxu0 0.0
        %686 = vmatpush1.msra.mxu0 0.0
        %687 = vmatprep.subr.mxu0 0.0
        %688 = vmatpush1.msra.mxu0 0.0
        %689 = vmatprep.subr.mxu0 0.0
        %690 = vmatpush1.msra.mxu0 0.0
        %691 = vmatprep.subr.mxu0 0.0
        %692 = vmatpush1.msra.mxu0 0.0
        %693 = vmatprep.subr.mxu0 0.0
        %694 = vmatpush1.msra.mxu0 0.0
        %695 = vmatprep.subr.mxu0 0.0
        %696 = vmatpush1.msra.mxu0 0.0
        %697 = vmatprep.subr.mxu0 0.0
        %698 = vmatpush1.msra.mxu0 0.0
        %699 = vmatprep.subr.mxu0 0.0
        %700 = vmatpush1.msra.mxu0 0.0
        %701 = vmatprep.subr.mxu0 0.0
        %702 = vmatpush1.msra.mxu0 0.0
        %703 = vmatprep.mubr.f32.mxu0 0.0
        %704 = vmatmul.mubr.f32.gmra.mrb[0].mxu0 %v637
        %v705 = vpop.f32.mrb[0].mxu0
        %v706 = vadd.f32 0.0, %v705
        %v707 = vpop.f32.mrb[0].mxu0
        %708 = vdwg.mxu0
        %v709 = vxor.u32 %v706, 2147483648
        %v710 = vmul.f32 %v709, 1.442695
        %v711 = vpow.pop %v710
        %v712 = vadd.f32 %v711, 1.0
        %v713 = vrcp.pop %v712
        %v714 = vmul.f32 1.0, %v713
        %v715 = vtanh.pop %v706
        %v716 = vmul.f32 %v714, %v715
        %v717 = vadd.f32 %v716, %v526
        %v718 = vadd.f32 %v313, %v717
        %719 = vst [vmem:[%s312] sm:$0xf] %v718
        %s720 = sand.u32 %s170, 1
        %s721 = scalar_lea.sflag [#allocation4], %s720
        %s722 = sand.u32 %s170, 1
        %s723 = smul.addr %s722, 4
        %s724 = scalar_lea.vmem [#allocation8], %s723
        // Predicated region
        $region57: #{tpu_custom_call.1} parent=43 // pred_check
          %p725 = pneg %p180
        $region58: #{tpu_custom_call.1} parent=43 // pred_check_branch
          %727 = sbr.rel (%p725) target = $region60
        $region59: #{tpu_custom_call.1} parent=43 // pred_region
          %s729 = ssub.s32 64, 64
          %730 = vsyncadd %s721, %s729
          %s731 = smul.addr %s26, 64
          %s732 = scalar_lea.hbm %s6, %s731
          %s734 = sshll.u32 %s724, 4
          %s735 = int_to_ptr.vmem [resolvable:$true] %s734
          %737 = dma.vmem_to_hbm [thread:$0]  %s735, 64, %s732, %s721
        $region60: #{tpu_custom_call.1} parent=43 // pred_fallthru
          _
      $region44: #{tpu_custom_call.1} parent=5 // pred_fallthru
        _
      %p738 = scmp.le.s32.totalorder 2, %s21
      // Predicated region
      $region61: #{tpu_custom_call.1} parent=5 // pred_check
        %p739 = pneg %p738
      $region62: #{tpu_custom_call.1} parent=5 // pred_check_branch
        %741 = sbr.rel (%p739) target = $region64
      $region63: #{tpu_custom_call.1} parent=5 // pred_region
        %s742 = ssub.s32 %s21, 2
        // Predicated region
        $region65: #{tpu_custom_call.1} parent=63 // pred_check
          %p743 = pneg %p186
        $region66: #{tpu_custom_call.1} parent=63 // pred_check_branch
          %745 = sbr.rel (%p743) target = $region68
        $region67: #{tpu_custom_call.1} parent=63 // pred_region
          %s746 = sand.u32 %s171, 1
          %s747 = scalar_lea.sflag [#allocation4], %s746
          %s748 = sand.u32 %s171, 1
          %s749 = smul.addr %s748, 4
          %s750 = scalar_lea.vmem [#allocation8], %s749
          %751 = dma.done %s747, 64
        $region68: #{tpu_custom_call.1} parent=63 // pred_fallthru
          _
      $region64: #{tpu_custom_call.1} parent=5 // pred_fallthru
        _
    $region6: #{tpu_custom_call.1} parent=1 // loop_footer
      %s25 = sadd.s32 1, %s21
    $region7: #{tpu_custom_call.1} parent=1 // loop_footer_branch
      %20 = sbr.rel target = $region3
    $region8: #{tpu_custom_call.1} parent=1 // loop_exit
      _
    %752 = vsyncpa [#allocation3], 1
    %s753 = scalar_lea.sflag [#allocation3], 1
    %754 = vsyncpa %s753, 1
    %755 = vsyncpa [#allocation6], 1
    %s756 = scalar_lea.sflag [#allocation6], 1
    %757 = vsyncpa %s756, 1
    %758 = vsyncpa [#allocation4], 1
    %s759 = scalar_lea.sflag [#allocation4], 1
    %760 = vsyncpa %s759, 1

</llo_original>
